<compile_context>
chip_gen: v7x
topology: tpu7x:2x2x1
jax: 0.10.0
libtpu: 0.0.40
codegen_flags: <defaults>
</compile_context>

<pallas_src>
import jax
import jax.numpy as jnp
from jax.experimental import pallas as pl
from jax.experimental.pallas import tpu as pltpu


# ----------------------------------------------------------------------------
# Pallas kernel: per d-slab,  Y = relu(Wm @ X + bias), bf16 in / f32 acc / bf16 out
# ----------------------------------------------------------------------------
def _deconv_gemm_relu_kernel(x_ref, w_ref, b_ref, o_ref):
    # x_ref: (bd, Cin, H*W) bf16   w_ref: (Cout*8, Cin) bf16
    # b_ref: (Cout*8, 1) f32       o_ref: (bd, Cout*8, H*W) bf16
    wm = w_ref[...]
    bias = b_ref[...]
    for dd in range(x_ref.shape[0]):                      # small, static unroll
        y = jnp.dot(wm, x_ref[dd], preferred_element_type=jnp.float32)
        y = jnp.maximum(y + bias, 0.0)                     # bias + ReLU in f32
        o_ref[dd] = y.astype(o_ref.dtype)                  # bf16 store


def _divisors(n):
    return [d for d in range(1, n + 1) if n % d == 0]


def _vmem_budget_bytes():
    """Chip-aware VMEM budget for block sizing (~3/8 of physical capacity)."""
    try:
        cap = int(pltpu.get_tpu_info().vmem_capacity_bytes)
        return max(16 << 20, min(48 << 20, (cap * 3) // 8))
    except Exception:
        return 24 << 20   # conservative fallback, safe even on v7x's 64 MiB VMEM


def upsampling_deconv_block(x, w, b):
    """PyTorch UpsamplingDeconvBlock forward (normalization='none').

    x: (N, Cin, D, H, W) float32
    w: (Cin, Cout, 2, 2, 2) float32   (nn.ConvTranspose3d weight layout)
    b: (Cout,) float32
    returns (N, Cout, 2D, 2H, 2W) float32
    """
    N, Cin, D, H, W = x.shape
    assert w.shape[0] == Cin and w.shape[2:] == (2, 2, 2)
    Cout = w.shape[1]
    R = Cout * 8                       # GEMM rows: (cout, a, b, c), always %8==0
    HW = H * W                         # GEMM lanes

    # ---- host-side layout prep (one coalesced pass over the *small* x) ------
    # (N, Cin, D, H, W) -> (N, D, Cin, H*W), bf16 cast folded into the copy.
    xt = jnp.transpose(x.reshape(N, Cin, D, HW), (0, 2, 1, 3)).astype(jnp.bfloat16)
    # Weight rows ordered (cout, a, b, c) -> bias must be jnp.repeat (NOT tile).
    wm = jnp.transpose(w, (1, 2, 3, 4, 0)).reshape(R, Cin).astype(jnp.bfloat16)
    bias2 = jnp.repeat(b.astype(jnp.float32), 8).reshape(R, 1)

    # ---- chip-aware block size over D ----------------------------------------
    budget = _vmem_budget_bytes()
    per_d = HW * 2 * (Cin + R)                    # one d-slab of x + out (bf16)
    const_bytes = 2 * (R * Cin * 2) + 2 * (R * 4)  # resident weight + bias
    steps_target = min(4, N * D)                   # megacore / pipeline depth
    bd = 1
    for cand in _divisors(D):
        if const_bytes + 2 * cand * per_d > budget:   # double-buffered blocks
            continue
        if N * (D // cand) < steps_target:
            continue
        bd = max(bd, cand)
    footprint = const_bytes + 2 * bd * per_d
    vmem_limit = max(16 << 20, footprint + (4 << 20))

    raw = pl.pallas_call(
        _deconv_gemm_relu_kernel,
        out_shape=jax.ShapeDtypeStruct((N, D, R, HW), jnp.bfloat16),
        grid_spec=pltpu.PrefetchScalarGridSpec(
            num_scalar_prefetch=0,
            grid=(N, D // bd),
            in_specs=[
                pl.BlockSpec((None, bd, Cin, HW), lambda n, dblk: (n, dblk, 0, 0)),
                pl.BlockSpec((R, Cin), lambda n, dblk: (0, 0)),
                pl.BlockSpec((R, 1), lambda n, dblk: (0, 0)),
            ],
            out_specs=pl.BlockSpec((None, bd, R, HW),
                                   lambda n, dblk: (n, dblk, 0, 0)),
        ),
        compiler_params=pltpu.CompilerParams(
            dimension_semantics=("parallel", "parallel"),
            vmem_limit_bytes=int(vmem_limit),
        ),
    )(xt, wm, bias2)

    # ---- epilogue: one fused transpose + f32 upcast ---------------------------
    # raw[n, d, (cout,a,b,c), (h,w)] -> NCDHW.  Inner read runs are W elements
    # (two sequential bf16 streams zipped for the (w,c) interleave); writes are
    # contiguous f32.  This is the only full pass over the big tensor.
    out = raw.reshape(N, D, Cout, 2, 2, 2, H, W)        # (n, d, cout, a, b, c, h, w)
    out = jnp.transpose(out, (0, 2, 1, 3, 6, 4, 7, 5))  # (n, cout, d, a, h, b, w, c)
    return out.reshape(N, Cout, 2 * D, 2 * H, 2 * W).astype(jnp.float32)


# ----------------------------------------------------------------------------
# Pure-JAX reference (f32 everywhere) for a correctness check
# ----------------------------------------------------------------------------
def _reference(x, w, b):
    N, Cin, D, H, W = x.shape
    Cout = w.shape[1]
    y = jnp.einsum("nidhw,ioabc->nodahbwc", x, w,
                   preferred_element_type=jnp.float32)
    y = y.reshape(N, Cout, 2 * D, 2 * H, 2 * W) + b.reshape(1, -1, 1, 1, 1)
    return jnp.maximum(y, 0.0)


if __name__ == "__main__":
    key = jax.random.PRNGKey(0)
    kx, kw, kb = jax.random.split(key, 3)

    # small shapes consistent with the module (decoder stage 32 -> 16)
    N, Cin, Cout, D, H, W = 2, 32, 16, 8, 8, 8
    fan_in = Cin * 2 * 2 * 2
    x = jax.random.normal(kx, (N, Cin, D, H, W), jnp.float32)
    w = jax.random.normal(kw, (Cin, Cout, 2, 2, 2), jnp.float32) / jnp.sqrt(
        float(fan_in))
    b = jax.random.normal(kb, (Cout,), jnp.float32) * 0.01

    fwd = jax.jit(upsampling_deconv_block)
    out = fwd(x, w, b)
    jax.block_until_ready(out)

    assert out.shape == (N, Cout, 2 * D, 2 * H, 2 * W), out.shape
    assert bool(jnp.all(jnp.isfinite(out)))

    ref = _reference(x, w, b)
    err = float(jnp.max(jnp.abs(out - ref)))
    assert err < 5e-2, f"max abs error vs reference: {err}"

    print("KERNEL_OK")
</pallas_src>

<mosaic_0001>
module attributes {stable_mosaic.version = 11 : i64} {
  func.func @_deconv_gemm_relu_kernel(%arg0: i32, %arg1: i32, %arg2: memref<1x4x32x64xbf16, #tpu.memory_space<vmem>>, %arg3: memref<128x32xbf16, #tpu.memory_space<vmem>>, %arg4: memref<128x1xf32, #tpu.memory_space<vmem>>, %arg5: memref<1x4x128x64xbf16, #tpu.memory_space<vmem>>) attributes {dimension_semantics = [#tpu.dimension_semantics<parallel>, #tpu.dimension_semantics<parallel>], iteration_bounds = array<i64: 2, 2>, scalar_prefetch = 0 : i64, scratch_operands = 0 : i64, tpu.core_type = #tpu.core_type<tc>, window_params = [{transform_indices = @transform_0, window_bounds = array<i64: 1, 4, 32, 64>}, {pipeline_mode = #tpu.pipeline_mode<synchronous>, transform_indices = @transform_1, window_bounds = array<i64: 128, 32>}, {pipeline_mode = #tpu.pipeline_mode<synchronous>, transform_indices = @transform_2, window_bounds = array<i64: 128, 1>}, {transform_indices = @transform_3, window_bounds = array<i64: 1, 4, 128, 64>}]} {
    %c0 = arith.constant 0 : index
    %c0_0 = arith.constant 0 : index
    %0 = vector.load %arg3[%c0, %c0_0] : memref<128x32xbf16, #tpu.memory_space<vmem>>, vector<128x32xbf16>
    %c0_1 = arith.constant 0 : index
    %c0_2 = arith.constant 0 : index
    %1 = vector.load %arg4[%c0_1, %c0_2] : memref<128x1xf32, #tpu.memory_space<vmem>>, vector<128x1xf32>
    %c0_3 = arith.constant 0 : index
    %c0_4 = arith.constant 0 : index
    %c0_5 = arith.constant 0 : index
    %c0_6 = arith.constant 0 : index
    %2 = vector.load %arg2[%c0_3, %c0_4, %c0_5, %c0_6] : memref<1x4x32x64xbf16, #tpu.memory_space<vmem>>, vector<1x1x32x64xbf16>
    %3 = vector.shape_cast %2 : vector<1x1x32x64xbf16> to vector<32x64xbf16>
    %cst = arith.constant dense<0.000000e+00> : vector<128x64xf32>
    %4 = tpu.matmul %0, %3, %cst {dimension_numbers = #tpu.dot_dimension_numbers<[1], [0], [0], [1], [0, 0, 1, 1], [], []>} : vector<128x32xbf16>, vector<32x64xbf16>, vector<128x64xf32> -> vector<128x64xf32>
    %5 = vector.broadcast %1 : vector<128x1xf32> to vector<128x64xf32>
    %6 = arith.addf %4, %5 : vector<128x64xf32>
    %cst_7 = arith.constant 0.000000e+00 : f32
    %7 = vector.broadcast %cst_7 : f32 to vector<128x64xf32>
    %8 = arith.maximumf %6, %7 : vector<128x64xf32>
    %9 = arith.truncf %8 : vector<128x64xf32> to vector<128x64xbf16>
    %c0_8 = arith.constant 0 : index
    %c0_9 = arith.constant 0 : index
    %c0_10 = arith.constant 0 : index
    %c0_11 = arith.constant 0 : index
    %10 = vector.load %arg5[%c0_8, %c0_9, %c0_10, %c0_11] : memref<1x4x128x64xbf16, #tpu.memory_space<vmem>>, vector<1x1x128x64xbf16>
    %11 = vector.shape_cast %10 : vector<1x1x128x64xbf16> to vector<128x64xbf16>
    %12 = vector.shape_cast %9 : vector<128x64xbf16> to vector<1x1x128x64xbf16>
    tpu.vector_store %arg5[%c0_8, %c0_9, %c0_10, %c0_11], %12 {strides = array<i32>} : memref<1x4x128x64xbf16, #tpu.memory_space<vmem>>, vector<1x1x128x64xbf16>,
    %c0_12 = arith.constant 0 : index
    %c1 = arith.constant 1 : index
    %c0_13 = arith.constant 0 : index
    %c0_14 = arith.constant 0 : index
    %13 = vector.load %arg2[%c0_12, %c1, %c0_13, %c0_14] : memref<1x4x32x64xbf16, #tpu.memory_space<vmem>>, vector<1x1x32x64xbf16>
    %14 = vector.shape_cast %13 : vector<1x1x32x64xbf16> to vector<32x64xbf16>
    %cst_15 = arith.constant dense<0.000000e+00> : vector<128x64xf32>
    %15 = tpu.matmul %0, %14, %cst_15 {dimension_numbers = #tpu.dot_dimension_numbers<[1], [0], [0], [1], [0, 0, 1, 1], [], []>} : vector<128x32xbf16>, vector<32x64xbf16>, vector<128x64xf32> -> vector<128x64xf32>
    %16 = vector.broadcast %1 : vector<128x1xf32> to vector<128x64xf32>
    %17 = arith.addf %15, %16 : vector<128x64xf32>
    %cst_16 = arith.constant 0.000000e+00 : f32
    %18 = vector.broadcast %cst_16 : f32 to vector<128x64xf32>
    %19 = arith.maximumf %17, %18 : vector<128x64xf32>
    %20 = arith.truncf %19 : vector<128x64xf32> to vector<128x64xbf16>
    %c0_17 = arith.constant 0 : index
    %c1_18 = arith.constant 1 : index
    %c0_19 = arith.constant 0 : index
    %c0_20 = arith.constant 0 : index
    %21 = vector.load %arg5[%c0_17, %c1_18, %c0_19, %c0_20] : memref<1x4x128x64xbf16, #tpu.memory_space<vmem>>, vector<1x1x128x64xbf16>
    %22 = vector.shape_cast %21 : vector<1x1x128x64xbf16> to vector<128x64xbf16>
    %23 = vector.shape_cast %20 : vector<128x64xbf16> to vector<1x1x128x64xbf16>
    tpu.vector_store %arg5[%c0_17, %c1_18, %c0_19, %c0_20], %23 {strides = array<i32>} : memref<1x4x128x64xbf16, #tpu.memory_space<vmem>>, vector<1x1x128x64xbf16>,
    %c0_21 = arith.constant 0 : index
    %c2 = arith.constant 2 : index
    %c0_22 = arith.constant 0 : index
    %c0_23 = arith.constant 0 : index
    %24 = vector.load %arg2[%c0_21, %c2, %c0_22, %c0_23] : memref<1x4x32x64xbf16, #tpu.memory_space<vmem>>, vector<1x1x32x64xbf16>
    %25 = vector.shape_cast %24 : vector<1x1x32x64xbf16> to vector<32x64xbf16>
    %cst_24 = arith.constant dense<0.000000e+00> : vector<128x64xf32>
    %26 = tpu.matmul %0, %25, %cst_24 {dimension_numbers = #tpu.dot_dimension_numbers<[1], [0], [0], [1], [0, 0, 1, 1], [], []>} : vector<128x32xbf16>, vector<32x64xbf16>, vector<128x64xf32> -> vector<128x64xf32>
    %27 = vector.broadcast %1 : vector<128x1xf32> to vector<128x64xf32>
    %28 = arith.addf %26, %27 : vector<128x64xf32>
    %cst_25 = arith.constant 0.000000e+00 : f32
    %29 = vector.broadcast %cst_25 : f32 to vector<128x64xf32>
    %30 = arith.maximumf %28, %29 : vector<128x64xf32>
    %31 = arith.truncf %30 : vector<128x64xf32> to vector<128x64xbf16>
    %c0_26 = arith.constant 0 : index
    %c2_27 = arith.constant 2 : index
    %c0_28 = arith.constant 0 : index
    %c0_29 = arith.constant 0 : index
    %32 = vector.load %arg5[%c0_26, %c2_27, %c0_28, %c0_29] : memref<1x4x128x64xbf16, #tpu.memory_space<vmem>>, vector<1x1x128x64xbf16>
    %33 = vector.shape_cast %32 : vector<1x1x128x64xbf16> to vector<128x64xbf16>
    %34 = vector.shape_cast %31 : vector<128x64xbf16> to vector<1x1x128x64xbf16>
    tpu.vector_store %arg5[%c0_26, %c2_27, %c0_28, %c0_29], %34 {strides = array<i32>} : memref<1x4x128x64xbf16, #tpu.memory_space<vmem>>, vector<1x1x128x64xbf16>,
    %c0_30 = arith.constant 0 : index
    %c3 = arith.constant 3 : index
    %c0_31 = arith.constant 0 : index
    %c0_32 = arith.constant 0 : index
    %35 = vector.load %arg2[%c0_30, %c3, %c0_31, %c0_32] : memref<1x4x32x64xbf16, #tpu.memory_space<vmem>>, vector<1x1x32x64xbf16>
    %36 = vector.shape_cast %35 : vector<1x1x32x64xbf16> to vector<32x64xbf16>
    %cst_33 = arith.constant dense<0.000000e+00> : vector<128x64xf32>
    %37 = tpu.matmul %0, %36, %cst_33 {dimension_numbers = #tpu.dot_dimension_numbers<[1], [0], [0], [1], [0, 0, 1, 1], [], []>} : vector<128x32xbf16>, vector<32x64xbf16>, vector<128x64xf32> -> vector<128x64xf32>
    %38 = vector.broadcast %1 : vector<128x1xf32> to vector<128x64xf32>
    %39 = arith.addf %37, %38 : vector<128x64xf32>
    %cst_34 = arith.constant 0.000000e+00 : f32
    %40 = vector.broadcast %cst_34 : f32 to vector<128x64xf32>
    %41 = arith.maximumf %39, %40 : vector<128x64xf32>
    %42 = arith.truncf %41 : vector<128x64xf32> to vector<128x64xbf16>
    %c0_35 = arith.constant 0 : index
    %c3_36 = arith.constant 3 : index
    %c0_37 = arith.constant 0 : index
    %c0_38 = arith.constant 0 : index
    %43 = vector.load %arg5[%c0_35, %c3_36, %c0_37, %c0_38] : memref<1x4x128x64xbf16, #tpu.memory_space<vmem>>, vector<1x1x128x64xbf16>
    %44 = vector.shape_cast %43 : vector<1x1x128x64xbf16> to vector<128x64xbf16>
    %45 = vector.shape_cast %42 : vector<128x64xbf16> to vector<1x1x128x64xbf16>
    tpu.vector_store %arg5[%c0_35, %c3_36, %c0_37, %c0_38], %45 {strides = array<i32>} : memref<1x4x128x64xbf16, #tpu.memory_space<vmem>>, vector<1x1x128x64xbf16>,
    return
  }
  func.func @transform_0(%arg0: i32, %arg1: i32) -> (i32, i32, i32, i32) {
    %c0_i32 = arith.constant 0 : i32
    %c0_i32_0 = arith.constant 0 : i32
    %c0_i32_1 = arith.constant 0 : i32
    return %arg0, %arg1, %c0_i32, %c0_i32_0 : i32, i32, i32, i32
  }
  func.func @transform_1(%arg0: i32, %arg1: i32) -> (i32, i32) {
    %c0_i32 = arith.constant 0 : i32
    %c0_i32_0 = arith.constant 0 : i32
    %c0_i32_1 = arith.constant 0 : i32
    return %c0_i32, %c0_i32_0 : i32, i32
  }
  func.func @transform_2(%arg0: i32, %arg1: i32) -> (i32, i32) {
    %c0_i32 = arith.constant 0 : i32
    %c0_i32_0 = arith.constant 0 : i32
    %c0_i32_1 = arith.constant 0 : i32
    return %c0_i32, %c0_i32_0 : i32, i32
  }
  func.func @transform_3(%arg0: i32, %arg1: i32) -> (i32, i32, i32, i32) {
    %c0_i32 = arith.constant 0 : i32
    %c0_i32_0 = arith.constant 0 : i32
    %c0_i32_1 = arith.constant 0 : i32
    return %arg0, %arg1, %c0_i32, %c0_i32_0 : i32, i32, i32, i32
  }
}

</mosaic_0001>

<llo_original>
// kernel: upsampling_deconv_block.1
$region0: #{upsampling_deconv_block.1}
  #allocation0 [shape = 'u32[]', space=smem, size = 0x4, offset = 0x4, fixed_abs, tag = 'smem constant byte address 0x4 - core index']
  #allocation1 [shape = 'u32[144,128]{1,0:T(1,128)}', space=vmem, size = 0x12000, scoped, tag = 'internal scratch']
  %s0 = inlined_call_operand.vmem [shape: bf16[2,8,32,64], index: 0, kind: input, shape index: {}]
  %s1 = inlined_call_operand.vmem [shape: bf16[128,32], index: 1, kind: input, shape index: {}]
  %s2 = inlined_call_operand.vmem [shape: f32[128,1], index: 2, kind: input, shape index: {}]
  %s3 = inlined_call_operand.vmem [shape: bf16[2,8,128,64], index: 3, kind: output, shape index: {}]
  %s4 = sld [smem:[#allocation0]]
  $region45: #{upsampling_deconv_block.1} parent=0
    _
  %s6 = ssub.s32 1, %s4
  %s7 = scalar_select 0, %s6, %s4
  loop: start=0, step=1, limit=6
  $region2: #{upsampling_deconv_block.1} parent=0 // loop_pre_header
    _
  $region3: #{upsampling_deconv_block.1} parent=0 // loop_header
    %s9 = sphi 0, %s13
    %p10 = scmp.ge.s32.totalorder %s9, 6
    %s16 = sphi 0, %s28
    %s17 = sphi 0, %s24
    %s18 = sphi 0, %s16
    %s19 = sphi 0, %s17
    %s20 = sphi 0, %s18
    %s21 = sphi 0, %s19
    %s33 = sphi 0, %s35
    %s36 = sphi 0, %s33
    %s37 = sphi 0, %s36
    %s53 = sphi 0, %s37
    %s57 = sphi 0, %s57
    %s59 = sphi 0, %s57
    %s60 = sphi 0, %s59
    %s74 = sphi 0, %s60
    %s78 = sphi 0, %s78
    %s80 = sphi 0, %s78
    %s81 = sphi 0, %s80
    %s95 = sphi 0, %s81
    %s103 = sphi 0, %s105
    %s106 = sphi 0, %s103
    %s107 = sphi 0, %s106
    %s123 = sphi 0, %s107
  $region4: #{upsampling_deconv_block.1} parent=0 // loop_header_branch
    %12 = sbr.rel (%p10) target = $region8
  $region5: #{upsampling_deconv_block.1} parent=0 // loop_body
    %s14 = ssub.s32 %s9, 1
    %s15 = ssub.s32 %s9, 2
    %s22 = sadd.s32 1, %s17
    %p23 = scmp.ge.s32.totalorder %s22, 2
    %s24 = scalar_select %p23, 0, %s22
    %s25 = sadd.s32 1, %s16
    %s26 = scalar_select %p23, %s25, %s16
    %p27 = scmp.ge.s32.totalorder %s26, 2
    %s28 = scalar_select %p27, 0, %s26
    %s29 = ssub.s32 %s16, %s28
    %s30 = ssub.s32 %s17, %s24
    %s31 = sor.u32 %s29, %s30
    %p32 = scmp.eq.s32.totalorder %s31, 0
    %s34 = sadd.s32 %s33, 1
    %s35 = scalar_select %p32, %s33, %s34
    %p38 = pneg %p32
    %p39 = scmp.eq.s32.totalorder %s9, 3
    %p40 = por %p38, %p39
    %p41 = scmp.ne.s32.totalorder %s33, %s36
    %p42 = scmp.eq.s32.totalorder %s9, 0
    %p43 = por %p41, %p42
    %p44 = scmp.ne.s32.totalorder %s33, %s36
    %p45 = scmp.eq.s32.totalorder %s14, 3
    %p46 = por %p44, %p45
    %p47 = scmp.ne.s32.totalorder %s36, %s37
    %p48 = scmp.eq.s32.totalorder %s14, 0
    %p49 = por %p47, %p48
    %p50 = scmp.ne.s32.totalorder %s36, %s37
    %p51 = scmp.eq.s32.totalorder %s15, 3
    %p52 = por %p50, %p51
    %p54 = scmp.ne.s32.totalorder %s37, %s53
    %p55 = scmp.eq.s32.totalorder %s15, 0
    %p56 = por %p54, %p55
    %s58 = sadd.s32 %s57, 1
    %p61 = scmp.eq.s32.totalorder %s9, 3
    %p62 = scmp.ne.s32.totalorder %s57, %s59
    %p63 = scmp.eq.s32.totalorder %s9, 0
    %p64 = por %p62, %p63
    %p65 = scmp.ne.s32.totalorder %s57, %s59
    %p66 = scmp.eq.s32.totalorder %s14, 3
    %p67 = por %p65, %p66
    %p68 = scmp.ne.s32.totalorder %s59, %s60
    %p69 = scmp.eq.s32.totalorder %s14, 0
    %p70 = por %p68, %p69
    %p71 = scmp.ne.s32.totalorder %s59, %s60
    %p72 = scmp.eq.s32.totalorder %s15, 3
    %p73 = por %p71, %p72
    %p75 = scmp.ne.s32.totalorder %s60, %s74
    %p76 = scmp.eq.s32.totalorder %s15, 0
    %p77 = por %p75, %p76
    %s79 = sadd.s32 %s78, 1
    %p82 = scmp.eq.s32.totalorder %s9, 3
    %p83 = scmp.ne.s32.totalorder %s78, %s80
    %p84 = scmp.eq.s32.totalorder %s9, 0
    %p85 = por %p83, %p84
    %p86 = scmp.ne.s32.totalorder %s78, %s80
    %p87 = scmp.eq.s32.totalorder %s14, 3
    %p88 = por %p86, %p87
    %p89 = scmp.ne.s32.totalorder %s80, %s81
    %p90 = scmp.eq.s32.totalorder %s14, 0
    %p91 = por %p89, %p90
    %p92 = scmp.ne.s32.totalorder %s80, %s81
    %p93 = scmp.eq.s32.totalorder %s15, 3
    %p94 = por %p92, %p93
    %p96 = scmp.ne.s32.totalorder %s81, %s95
    %p97 = scmp.eq.s32.totalorder %s15, 0
    %p98 = por %p96, %p97
    %s99 = ssub.s32 %s16, %s28
    %s100 = ssub.s32 %s17, %s24
    %s101 = sor.u32 %s99, %s100
    %p102 = scmp.eq.s32.totalorder %s101, 0
    %s104 = sadd.s32 %s103, 1
    %s105 = scalar_select %p102, %s103, %s104
    %p108 = pneg %p102
    %p109 = scmp.eq.s32.totalorder %s9, 3
    %p110 = por %p108, %p109
    %p111 = scmp.ne.s32.totalorder %s103, %s106
    %p112 = scmp.eq.s32.totalorder %s9, 0
    %p113 = por %p111, %p112
    %p114 = scmp.ne.s32.totalorder %s103, %s106
    %p115 = scmp.eq.s32.totalorder %s14, 3
    %p116 = por %p114, %p115
    %p117 = scmp.ne.s32.totalorder %s106, %s107
    %p118 = scmp.eq.s32.totalorder %s14, 0
    %p119 = por %p117, %p118
    %p120 = scmp.ne.s32.totalorder %s106, %s107
    %p121 = scmp.eq.s32.totalorder %s15, 3
    %p122 = por %p120, %p121
    %p124 = scmp.ne.s32.totalorder %s107, %s123
    %p125 = scmp.eq.s32.totalorder %s15, 0
    %p126 = por %p124, %p125
    %p127 = scmp.le.s32.totalorder 1, %s9
    %p128 = scmp.lt.s32.totalorder %s9, 5
    %p129 = pnand %p127, %p128
    %p130 = pneg %p129
    // Predicated region
    $region9: #{upsampling_deconv_block.1} parent=5 // pred_check
      _
    $region10: #{upsampling_deconv_block.1} parent=5 // pred_check_branch
      %132 = sbr.rel (%p129) target = $region12
    $region11: #{upsampling_deconv_block.1} parent=5 // pred_region
      %s133 = ssub.s32 %s9, 1
      // Predicated region
      $region13: #{upsampling_deconv_block.1} parent=11 // pred_check
        %p134 = pneg %p70
      $region14: #{upsampling_deconv_block.1} parent=11 // pred_check_branch
        %136 = sbr.rel (%p134) target = $region16
      $region15: #{upsampling_deconv_block.1} parent=11 // pred_region
        _
      $region16: #{upsampling_deconv_block.1} parent=11 // pred_fallthru
        _
      // Predicated region
      $region17: #{upsampling_deconv_block.1} parent=11 // pred_check
        %p137 = pneg %p91
      $region18: #{upsampling_deconv_block.1} parent=11 // pred_check_branch
        %139 = sbr.rel (%p137) target = $region20
      $region19: #{upsampling_deconv_block.1} parent=11 // pred_region
        _
      $region20: #{upsampling_deconv_block.1} parent=11 // pred_fallthru
        _
    $region12: #{upsampling_deconv_block.1} parent=5 // pred_fallthru
      _
    %p140 = scmp.lt.s32.totalorder %s9, 4
    // Predicated region
    $region21: #{upsampling_deconv_block.1} parent=5 // pred_check
      %p141 = pneg %p140
    $region22: #{upsampling_deconv_block.1} parent=5 // pred_check_branch
      %143 = sbr.rel (%p141) target = $region24
    $region23: #{upsampling_deconv_block.1} parent=5 // pred_region
      // Predicated region
      $region25: #{upsampling_deconv_block.1} parent=23 // pred_check
        %p144 = pneg %p43
      $region26: #{upsampling_deconv_block.1} parent=23 // pred_check_branch
        %146 = sbr.rel (%p144) target = $region28
      $region27: #{upsampling_deconv_block.1} parent=23 // pred_region
        %s147 = smul.u32 4, %s17
        %p148 = scmp.lt.s32.totalorder %s16, 1
        %s149 = scalar_select %p148, %s16, 1
        %p150 = scmp.lt.s32.totalorder %s147, 7
        %s151 = scalar_select %p150, %s147, 7
        %s152 = smul.addr %s151, 4
        %s153 = smul.addr %s149, 32
        %s154 = sadd.s32 %s152, %s153
        %s155 = smul.addr %s154, 4
        %s156 = scalar_lea.vmem %s0, %s155
        %s157 = smul.u32 4, %s17
      $region28: #{upsampling_deconv_block.1} parent=23 // pred_fallthru
        _
    $region24: #{upsampling_deconv_block.1} parent=5 // pred_fallthru
      _
    %p158 = scmp.le.s32.totalorder 1, %s9
    %p159 = scmp.lt.s32.totalorder %s9, 5
    %p160 = pnand %p158, %p159
    %p161 = pneg %p160
    // Predicated region
    $region29: #{upsampling_deconv_block.1} parent=5 // pred_check
      _
    $region30: #{upsampling_deconv_block.1} parent=5 // pred_check_branch
      %163 = sbr.rel (%p160) target = $region32
    $region31: #{upsampling_deconv_block.1} parent=5 // pred_region
      %s164 = ssub.s32 %s9, 1
      %s165 = smul.u32 4, %s19
      %p166 = scmp.lt.s32.totalorder %s18, 1
      %s167 = scalar_select %p166, %s18, 1
      %p168 = scmp.lt.s32.totalorder %s165, 7
      %s169 = scalar_select %p168, %s165, 7
      %s170 = smul.addr %s169, 4
      %s171 = smul.addr %s167, 32
      %s172 = sadd.s32 %s170, %s171
      %s173 = smul.addr %s172, 4
      %s174 = scalar_lea.vmem %s0, %s173
      %p175 = pneg %p49
      %p176 = pneg %p46
      %p177 = pneg %p70
      %p178 = pneg %p67
      %p179 = pneg %p91
      %p180 = pneg %p88
      %p181 = pneg %p119
      %p182 = pneg %p116
      %s183 = smul.u32 4, %s19
      %p184 = scmp.lt.s32.totalorder %s18, 1
      %s185 = scalar_select %p184, %s18, 1
      %p186 = scmp.lt.s32.totalorder %s183, 7
      %s187 = scalar_select %p186, %s183, 7
      %s188 = smul.addr %s187, 16
      %s189 = smul.addr %s185, 128
      %s190 = sadd.s32 %s188, %s189
      %s191 = smul.addr %s190, 4
      %s192 = scalar_lea.vmem %s3, %s191
      %s193 = smul.u32 4, %s19
      %p194 = scmp.lt.s32.totalorder %s18, 1
      %s195 = scalar_select %p194, %s18, 1
      %p196 = scmp.lt.s32.totalorder %s193, 7
      %s197 = scalar_select %p196, %s193, 7
      %s198 = smul.addr %s197, 4
      %s199 = smul.addr %s195, 32
      %s200 = sadd.s32 %s198, %s199
      %s201 = smul.addr %s200, 4
      %s202 = scalar_lea.vmem %s0, %s201
      %s203 = smul.u32 4, %s19
      %s204 = smul.u32 4, %s19
      %p205 = scmp.lt.s32.totalorder %s18, 1
      %s206 = scalar_select %p205, %s18, 1
      %p207 = scmp.lt.s32.totalorder %s204, 7
      %s208 = scalar_select %p207, %s204, 7
      %s209 = smul.addr %s208, 16
      %s210 = smul.addr %s206, 128
      %s211 = sadd.s32 %s209, %s210
      %s212 = smul.addr %s211, 4
      %s213 = scalar_lea.vmem %s3, %s212
      %s214 = smul.u32 4, %s19
      %v216 = vld [vmem:[%s1] sm:$0xf]
      %v217 = vld [vmem:[%s1 + $0x4] sm:$0xf]
      %v218 = vld [vmem:[%s1 + $0x8] sm:$0xf]
      %v219 = vld [vmem:[%s1 + $0xc] sm:$0xf]
      %v220 = vld [vmem:[%s1 + $0x10] sm:$0xf]
      %v221 = vld [vmem:[%s1 + $0x14] sm:$0xf]
      %v222 = vld [vmem:[%s1 + $0x18] sm:$0xf]
      %v223 = vld [vmem:[%s1 + $0x1c] sm:$0xf]
      %v224 = vld [vmem:[%s1 + $0x20] sm:$0xf]
      %v225 = vld [vmem:[%s1 + $0x24] sm:$0xf]
      %v226 = vld [vmem:[%s1 + $0x28] sm:$0xf]
      %v227 = vld [vmem:[%s1 + $0x2c] sm:$0xf]
      %v228 = vld [vmem:[%s1 + $0x30] sm:$0xf]
      %v229 = vld [vmem:[%s1 + $0x34] sm:$0xf]
      %v230 = vld [vmem:[%s1 + $0x38] sm:$0xf]
      %v231 = vld [vmem:[%s1 + $0x3c] sm:$0xf]
      %v232 = vld [vmem:[%s2] sm:$0xff]
      %v233 = vld [vmem:[%s2 + $0x8] sm:$0xff]
      %v234 = vld [vmem:[%s2 + $0x10] sm:$0xff]
      %v235 = vld [vmem:[%s2 + $0x18] sm:$0xff]
      %v236 = vld [vmem:[%s2 + $0x20] sm:$0xff]
      %v237 = vld [vmem:[%s2 + $0x28] sm:$0xff]
      %v238 = vld [vmem:[%s2 + $0x30] sm:$0xff]
      %v239 = vld [vmem:[%s2 + $0x38] sm:$0xff]
      %v240 = vld [vmem:[%s2 + $0x40] sm:$0xff]
      %v241 = vld [vmem:[%s2 + $0x48] sm:$0xff]
      %v242 = vld [vmem:[%s2 + $0x50] sm:$0xff]
      %v243 = vld [vmem:[%s2 + $0x58] sm:$0xff]
      %v244 = vld [vmem:[%s2 + $0x60] sm:$0xff]
      %v245 = vld [vmem:[%s2 + $0x68] sm:$0xff]
      %v246 = vld [vmem:[%s2 + $0x70] sm:$0xff]
      %v247 = vld [vmem:[%s2 + $0x78] sm:$0xff]
      %v248 = vld [vmem:[%s202] sm:$0xf]
      %v249 = vld [vmem:[%s202 + $0x4] sm:$0xf]
      %v250 = vld [vmem:[%s202 + $0x8] sm:$0xf]
      %v251 = vld [vmem:[%s202 + $0xc] sm:$0xf]
      %253 = vset.pattern.permute.xlu0 0
      %254 = vperm.xlu0 %253, %v232
      %v255 = vpop.permute.xlu0 %254
      %258 = vset.pattern.permute.xlu0 0
      %259 = vperm.xlu0 %258, %v233
      %v260 = vpop.permute.xlu0 %259
      %263 = vset.pattern.permute.xlu0 0
      %264 = vperm.xlu0 %263, %v234
      %v265 = vpop.permute.xlu0 %264
      %268 = vset.pattern.permute.xlu0 0
      %269 = vperm.xlu0 %268, %v235
      %v270 = vpop.permute.xlu0 %269
      %273 = vset.pattern.permute.xlu0 0
      %274 = vperm.xlu0 %273, %v236
      %v275 = vpop.permute.xlu0 %274
      %278 = vset.pattern.permute.xlu0 0
      %279 = vperm.xlu0 %278, %v237
      %v280 = vpop.permute.xlu0 %279
      %283 = vset.pattern.permute.xlu0 0
      %284 = vperm.xlu0 %283, %v238
      %v285 = vpop.permute.xlu0 %284
      %288 = vset.pattern.permute.xlu0 0
      %289 = vperm.xlu0 %288, %v239
      %v290 = vpop.permute.xlu0 %289
      %293 = vset.pattern.permute.xlu0 0
      %294 = vperm.xlu0 %293, %v240
      %v295 = vpop.permute.xlu0 %294
      %298 = vset.pattern.permute.xlu0 0
      %299 = vperm.xlu0 %298, %v241
      %v300 = vpop.permute.xlu0 %299
      %303 = vset.pattern.permute.xlu0 0
      %304 = vperm.xlu0 %303, %v242
      %v305 = vpop.permute.xlu0 %304
      %308 = vset.pattern.permute.xlu0 0
      %309 = vperm.xlu0 %308, %v243
      %v310 = vpop.permute.xlu0 %309
      %313 = vset.pattern.permute.xlu0 0
      %314 = vperm.xlu0 %313, %v244
      %v315 = vpop.permute.xlu0 %314
      %318 = vset.pattern.permute.xlu0 0
      %319 = vperm.xlu0 %318, %v245
      %v320 = vpop.permute.xlu0 %319
      %323 = vset.pattern.permute.xlu0 0
      %324 = vperm.xlu0 %323, %v246
      %v325 = vpop.permute.xlu0 %324
      %328 = vset.pattern.permute.xlu0 0
      %329 = vperm.xlu0 %328, %v247
      %v330 = vpop.permute.xlu0 %329
      %v348 = vunpack.c.l.b16 %v216
      %v349 = vunpack.c.l.b16 %v217
      %v350 = vunpack.c.l.b16 %v218
      %v351 = vunpack.c.l.b16 %v219
      %v352 = vunpack.c.l.b16 %v220
      %v353 = vunpack.c.l.b16 %v221
      %v354 = vunpack.c.l.b16 %v222
      %v355 = vunpack.c.l.b16 %v223
      %v356 = vunpack.c.l.b16 %v224
      %v357 = vunpack.c.l.b16 %v225
      %v358 = vunpack.c.l.b16 %v226
      %v359 = vunpack.c.l.b16 %v227
      %v360 = vunpack.c.l.b16 %v228
      %v361 = vunpack.c.l.b16 %v229
      %v362 = vunpack.c.l.b16 %v230
      %v363 = vunpack.c.l.b16 %v231
      %v364 = vpack.c.b16 %v349, %v348
      %v365 = vpack.c.b16 %v351, %v350
      %v366 = vpack.c.b16 %v353, %v352
      %v367 = vpack.c.b16 %v355, %v354
      %v368 = vpack.c.b16 %v357, %v356
      %v369 = vpack.c.b16 %v359, %v358
      %v370 = vpack.c.b16 %v361, %v360
      %v371 = vpack.c.b16 %v363, %v362
      %v376 = vunpack.c.l.b16 %v248
      %v377 = vunpack.c.l.b16 %v249
      %v378 = vunpack.c.l.b16 %v250
      %v379 = vunpack.c.l.b16 %v251
      %v380 = vpack.c.b16 %v377, %v376
      %v381 = vpack.c.b16 %v379, %v378
      %vm384 = vcmask 261120
      %v386 = vsel %vm384, %v364, 0
      %v389 = vsel %vm384, %v365, 0
      %v392 = vsel %vm384, %v366, 0
      %v395 = vsel %vm384, %v367, 0
      %v398 = vsel %vm384, %v368, 0
      %v401 = vsel %vm384, %v369, 0
      %v404 = vsel %vm384, %v370, 0
      %v407 = vsel %vm384, %v371, 0
      %409 = vmatprep.subr.bf16.mxu0 0
      %410 = vmatpush1.bf16.msra.mxu0 %v380
      %411 = vmatprep.subr.bf16.mxu0 0
      %412 = vmatpush1.bf16.msra.mxu0 %v381
      %413 = vmatprep.subr.bf16.mxu0 0
      %414 = vmatpush1.bf16.msra.mxu0 0
      %415 = vmatprep.subr.bf16.mxu0 0
      %416 = vmatpush1.bf16.msra.mxu0 0
      %417 = vmatprep.subr.bf16.mxu0 0
      %418 = vmatpush1.bf16.msra.mxu0 0
      %419 = vmatprep.subr.bf16.mxu0 0
      %420 = vmatpush1.bf16.msra.mxu0 0
      %421 = vmatprep.subr.bf16.mxu0 0
      %422 = vmatpush1.bf16.msra.mxu0 0
      %423 = vmatprep.subr.bf16.mxu0 0
      %424 = vmatpush1.bf16.msra.mxu0 0
      %425 = vmatprep.subr.bf16.mxu0 0
      %426 = vmatpush1.bf16.msra.mxu0 0
      %427 = vmatprep.subr.bf16.mxu0 0
      %428 = vmatpush1.bf16.msra.mxu0 0
      %429 = vmatprep.subr.bf16.mxu0 0
      %430 = vmatpush1.bf16.msra.mxu0 0
      %431 = vmatprep.subr.bf16.mxu0 0
      %432 = vmatpush1.bf16.msra.mxu0 0
      %433 = vmatprep.subr.bf16.mxu0 0
      %434 = vmatpush1.bf16.msra.mxu0 0
      %435 = vmatprep.subr.bf16.mxu0 0
      %436 = vmatpush1.bf16.msra.mxu0 0
      %437 = vmatprep.subr.bf16.mxu0 0
      %438 = vmatpush1.bf16.msra.mxu0 0
      %439 = vmatprep.subr.bf16.mxu0 0
      %440 = vmatpush1.bf16.msra.mxu0 0
      %441 = vmatprep.mubr.bf16.mxu0 0
      %442 = vmatmul.mubr.bf16.gmra.mrb[0].mxu0 %v386
      %v443 = vpop.f32.mrb[0].mxu0
      %v444 = vadd.f32 %v255, %v443
      %v445 = vpop.f32.mrb[0].mxu0
      %v446 = vpop.f32.mrb[0].mxu0
      %v447 = vadd.f32 %v260, %v446
      %v448 = vpop.f32.mrb[0].mxu0
      %449 = vmatprep.mubr.bf16.mxu0 0
      %450 = vmatmul.mubr.bf16.gmra.mrb[0].mxu0 %v389
      %v451 = vpop.f32.mrb[0].mxu0
      %v452 = vadd.f32 %v265, %v451
      %v453 = vpop.f32.mrb[0].mxu0
      %v454 = vpop.f32.mrb[0].mxu0
      %v455 = vadd.f32 %v270, %v454
      %v456 = vpop.f32.mrb[0].mxu0
      %457 = vmatprep.mubr.bf16.mxu0 0
      %458 = vmatmul.mubr.bf16.gmra.mrb[0].mxu0 %v392
      %v459 = vpop.f32.mrb[0].mxu0
      %v460 = vadd.f32 %v275, %v459
      %v461 = vpop.f32.mrb[0].mxu0
      %v462 = vpop.f32.mrb[0].mxu0
      %v463 = vadd.f32 %v280, %v462
      %v464 = vpop.f32.mrb[0].mxu0
      %465 = vmatprep.mubr.bf16.mxu0 0
      %466 = vmatmul.mubr.bf16.gmra.mrb[0].mxu0 %v395
      %v467 = vpop.f32.mrb[0].mxu0
      %v468 = vadd.f32 %v285, %v467
      %v469 = vpop.f32.mrb[0].mxu0
      %v470 = vpop.f32.mrb[0].mxu0
      %v471 = vadd.f32 %v290, %v470
      %v472 = vpop.f32.mrb[0].mxu0
      %473 = vmatprep.mubr.bf16.mxu0 0
      %474 = vmatmul.mubr.bf16.gmra.mrb[0].mxu0 %v398
      %v475 = vpop.f32.mrb[0].mxu0
      %v476 = vadd.f32 %v295, %v475
      %v477 = vpop.f32.mrb[0].mxu0
      %v478 = vpop.f32.mrb[0].mxu0
      %v479 = vadd.f32 %v300, %v478
      %v480 = vpop.f32.mrb[0].mxu0
      %481 = vmatprep.mubr.bf16.mxu0 0
      %482 = vmatmul.mubr.bf16.gmra.mrb[0].mxu0 %v401
      %v483 = vpop.f32.mrb[0].mxu0
      %v484 = vadd.f32 %v305, %v483
      %v485 = vpop.f32.mrb[0].mxu0
      %v486 = vpop.f32.mrb[0].mxu0
      %v487 = vadd.f32 %v310, %v486
      %v488 = vpop.f32.mrb[0].mxu0
      %489 = vmatprep.mubr.bf16.mxu0 0
      %490 = vmatmul.mubr.bf16.gmra.mrb[0].mxu0 %v404
      %v491 = vpop.f32.mrb[0].mxu0
      %v492 = vadd.f32 %v315, %v491
      %v493 = vpop.f32.mrb[0].mxu0
      %v494 = vpop.f32.mrb[0].mxu0
      %v495 = vadd.f32 %v320, %v494
      %v496 = vpop.f32.mrb[0].mxu0
      %497 = vmatprep.mubr.bf16.mxu0 0
      %498 = vmatmul.mubr.bf16.gmra.mrb[0].mxu0 %v407
      %v499 = vpop.f32.mrb[0].mxu0
      %v500 = vadd.f32 %v325, %v499
      %v501 = vpop.f32.mrb[0].mxu0
      %v502 = vpop.f32.mrb[0].mxu0
      %v503 = vadd.f32 %v330, %v502
      %v504 = vpop.f32.mrb[0].mxu0
      %505 = vdwg.mxu0
      %v506 = vmax.f32 %v444, 0.0
      %v507 = vmax.f32 %v447, 0.0
      %v508 = vmax.f32 %v452, 0.0
      %v509 = vmax.f32 %v455, 0.0
      %v510 = vmax.f32 %v460, 0.0
      %v511 = vmax.f32 %v463, 0.0
      %v512 = vmax.f32 %v468, 0.0
      %v513 = vmax.f32 %v471, 0.0
      %v514 = vmax.f32 %v476, 0.0
      %v515 = vmax.f32 %v479, 0.0
      %v516 = vmax.f32 %v484, 0.0
      %v517 = vmax.f32 %v487, 0.0
      %v518 = vmax.f32 %v492, 0.0
      %v519 = vmax.f32 %v495, 0.0
      %v520 = vmax.f32 %v500, 0.0
      %v521 = vmax.f32 %v503, 0.0
      %v522 = vpack.c.bf16 %v507, %v506
      %v523 = vpack.c.bf16 %v509, %v508
      %v524 = vpack.c.bf16 %v511, %v510
      %v525 = vpack.c.bf16 %v513, %v512
      %v526 = vpack.c.bf16 %v515, %v514
      %v527 = vpack.c.bf16 %v517, %v516
      %v528 = vpack.c.bf16 %v519, %v518
      %v529 = vpack.c.bf16 %v521, %v520
      %v538 = vunpack.c.l.b16 %v522
      %v539 = vunpack.c.h.b16 %v522
      %v540 = vunpack.c.l.b16 %v523
      %v541 = vunpack.c.h.b16 %v523
      %v542 = vunpack.c.l.b16 %v524
      %v543 = vunpack.c.h.b16 %v524
      %v544 = vunpack.c.l.b16 %v525
      %v545 = vunpack.c.h.b16 %v525
      %v546 = vunpack.c.l.b16 %v526
      %v547 = vunpack.c.h.b16 %v526
      %v548 = vunpack.c.l.b16 %v527
      %v549 = vunpack.c.h.b16 %v527
      %v550 = vunpack.c.l.b16 %v528
      %v551 = vunpack.c.h.b16 %v528
      %v552 = vunpack.c.l.b16 %v529
      %v553 = vunpack.c.h.b16 %v529
      %v554 = vpack.c.b16 %v538, %v538
      %v555 = vpack.c.b16 %v539, %v539
      %v556 = vpack.c.b16 %v540, %v540
      %v557 = vpack.c.b16 %v541, %v541
      %v558 = vpack.c.b16 %v542, %v542
      %v559 = vpack.c.b16 %v543, %v543
      %v560 = vpack.c.b16 %v544, %v544
      %v561 = vpack.c.b16 %v545, %v545
      %v562 = vpack.c.b16 %v546, %v546
      %v563 = vpack.c.b16 %v547, %v547
      %v564 = vpack.c.b16 %v548, %v548
      %v565 = vpack.c.b16 %v549, %v549
      %v566 = vpack.c.b16 %v550, %v550
      %v567 = vpack.c.b16 %v551, %v551
      %v568 = vpack.c.b16 %v552, %v552
      %v569 = vpack.c.b16 %v553, %v553
      %vm586 = vcmask 519168
      %587 = vst.msk [vmem:[%s213] sm:$0xf] %vm586, %v554
      %588 = vst.msk [vmem:[%s213 + $0x4] sm:$0xf] %vm586, %v555
      %589 = vst.msk [vmem:[%s213 + $0x8] sm:$0xf] %vm586, %v556
      %590 = vst.msk [vmem:[%s213 + $0xc] sm:$0xf] %vm586, %v557
      %591 = vst.msk [vmem:[%s213 + $0x10] sm:$0xf] %vm586, %v558
      %592 = vst.msk [vmem:[%s213 + $0x14] sm:$0xf] %vm586, %v559
      %593 = vst.msk [vmem:[%s213 + $0x18] sm:$0xf] %vm586, %v560
      %594 = vst.msk [vmem:[%s213 + $0x1c] sm:$0xf] %vm586, %v561
      %595 = vst.msk [vmem:[%s213 + $0x20] sm:$0xf] %vm586, %v562
      %596 = vst.msk [vmem:[%s213 + $0x24] sm:$0xf] %vm586, %v563
      %597 = vst.msk [vmem:[%s213 + $0x28] sm:$0xf] %vm586, %v564
      %598 = vst.msk [vmem:[%s213 + $0x2c] sm:$0xf] %vm586, %v565
      %599 = vst.msk [vmem:[%s213 + $0x30] sm:$0xf] %vm586, %v566
      %600 = vst.msk [vmem:[%s213 + $0x34] sm:$0xf] %vm586, %v567
      %601 = vst.msk [vmem:[%s213 + $0x38] sm:$0xf] %vm586, %v568
      %602 = vst.msk [vmem:[%s213 + $0x3c] sm:$0xf] %vm586, %v569
      %s603 = scalar_lea.vmem %s202, 16
      %v604 = vld [vmem:[%s603] sm:$0xf]
      %v605 = vld [vmem:[%s603 + $0x4] sm:$0xf]
      %v606 = vld [vmem:[%s603 + $0x8] sm:$0xf]
      %v607 = vld [vmem:[%s603 + $0xc] sm:$0xf]
      %v612 = vunpack.c.l.b16 %v604
      %v613 = vunpack.c.l.b16 %v605
      %v614 = vunpack.c.l.b16 %v606
      %v615 = vunpack.c.l.b16 %v607
      %v616 = vpack.c.b16 %v613, %v612
      %v617 = vpack.c.b16 %v615, %v614
      %620 = vmatprep.subr.bf16.mxu0 0
      %621 = vmatpush1.bf16.msra.mxu0 %v616
      %622 = vmatprep.subr.bf16.mxu0 0
      %623 = vmatpush1.bf16.msra.mxu0 %v617
      %624 = vmatprep.subr.bf16.mxu0 0
      %625 = vmatpush1.bf16.msra.mxu0 0
      %626 = vmatprep.subr.bf16.mxu0 0
      %627 = vmatpush1.bf16.msra.mxu0 0
      %628 = vmatprep.subr.bf16.mxu0 0
      %629 = vmatpush1.bf16.msra.mxu0 0
      %630 = vmatprep.subr.bf16.mxu0 0
      %631 = vmatpush1.bf16.msra.mxu0 0
      %632 = vmatprep.subr.bf16.mxu0 0
      %633 = vmatpush1.bf16.msra.mxu0 0
      %634 = vmatprep.subr.bf16.mxu0 0
      %635 = vmatpush1.bf16.msra.mxu0 0
      %636 = vmatprep.subr.bf16.mxu0 0
      %637 = vmatpush1.bf16.msra.mxu0 0
      %638 = vmatprep.subr.bf16.mxu0 0
      %639 = vmatpush1.bf16.msra.mxu0 0
      %640 = vmatprep.subr.bf16.mxu0 0
      %641 = vmatpush1.bf16.msra.mxu0 0
      %642 = vmatprep.subr.bf16.mxu0 0
      %643 = vmatpush1.bf16.msra.mxu0 0
      %644 = vmatprep.subr.bf16.mxu0 0
      %645 = vmatpush1.bf16.msra.mxu0 0
      %646 = vmatprep.subr.bf16.mxu0 0
      %647 = vmatpush1.bf16.msra.mxu0 0
      %648 = vmatprep.subr.bf16.mxu0 0
      %649 = vmatpush1.bf16.msra.mxu0 0
      %650 = vmatprep.subr.bf16.mxu0 0
      %651 = vmatpush1.bf16.msra.mxu0 0
      %652 = vmatprep.mubr.bf16.mxu0 0
      %653 = vmatmul.mubr.bf16.gmra.mrb[0].mxu0 %v386
      %v654 = vpop.f32.mrb[0].mxu0
      %v655 = vadd.f32 %v255, %v654
      %v656 = vpop.f32.mrb[0].mxu0
      %v657 = vpop.f32.mrb[0].mxu0
      %v658 = vadd.f32 %v260, %v657
      %v659 = vpop.f32.mrb[0].mxu0
      %660 = vmatprep.mubr.bf16.mxu0 0
      %661 = vmatmul.mubr.bf16.gmra.mrb[0].mxu0 %v389
      %v662 = vpop.f32.mrb[0].mxu0
      %v663 = vadd.f32 %v265, %v662
      %v664 = vpop.f32.mrb[0].mxu0
      %v665 = vpop.f32.mrb[0].mxu0
      %v666 = vadd.f32 %v270, %v665
      %v667 = vpop.f32.mrb[0].mxu0
      %668 = vmatprep.mubr.bf16.mxu0 0
      %669 = vmatmul.mubr.bf16.gmra.mrb[0].mxu0 %v392
      %v670 = vpop.f32.mrb[0].mxu0
      %v671 = vadd.f32 %v275, %v670
      %v672 = vpop.f32.mrb[0].mxu0
      %v673 = vpop.f32.mrb[0].mxu0
      %v674 = vadd.f32 %v280, %v673
      %v675 = vpop.f32.mrb[0].mxu0
      %676 = vmatprep.mubr.bf16.mxu0 0
      %677 = vmatmul.mubr.bf16.gmra.mrb[0].mxu0 %v395
      %v678 = vpop.f32.mrb[0].mxu0
      %v679 = vadd.f32 %v285, %v678
      %v680 = vpop.f32.mrb[0].mxu0
      %v681 = vpop.f32.mrb[0].mxu0
      %v682 = vadd.f32 %v290, %v681
      %v683 = vpop.f32.mrb[0].mxu0
      %684 = vmatprep.mubr.bf16.mxu0 0
      %685 = vmatmul.mubr.bf16.gmra.mrb[0].mxu0 %v398
      %v686 = vpop.f32.mrb[0].mxu0
      %v687 = vadd.f32 %v295, %v686
      %v688 = vpop.f32.mrb[0].mxu0
      %v689 = vpop.f32.mrb[0].mxu0
      %v690 = vadd.f32 %v300, %v689
      %v691 = vpop.f32.mrb[0].mxu0
      %692 = vmatprep.mubr.bf16.mxu0 0
      %693 = vmatmul.mubr.bf16.gmra.mrb[0].mxu0 %v401
      %v694 = vpop.f32.mrb[0].mxu0
      %v695 = vadd.f32 %v305, %v694
      %v696 = vpop.f32.mrb[0].mxu0
      %v697 = vpop.f32.mrb[0].mxu0
      %v698 = vadd.f32 %v310, %v697
      %v699 = vpop.f32.mrb[0].mxu0
      %700 = vmatprep.mubr.bf16.mxu0 0
      %701 = vmatmul.mubr.bf16.gmra.mrb[0].mxu0 %v404
      %v702 = vpop.f32.mrb[0].mxu0
      %v703 = vadd.f32 %v315, %v702
      %v704 = vpop.f32.mrb[0].mxu0
      %v705 = vpop.f32.mrb[0].mxu0
      %v706 = vadd.f32 %v320, %v705
      %v707 = vpop.f32.mrb[0].mxu0
      %708 = vmatprep.mubr.bf16.mxu0 0
      %709 = vmatmul.mubr.bf16.gmra.mrb[0].mxu0 %v407
      %v710 = vpop.f32.mrb[0].mxu0
      %v711 = vadd.f32 %v325, %v710
      %v712 = vpop.f32.mrb[0].mxu0
      %v713 = vpop.f32.mrb[0].mxu0
      %v714 = vadd.f32 %v330, %v713
      %v715 = vpop.f32.mrb[0].mxu0
      %716 = vdwg.mxu0
      %v717 = vmax.f32 %v655, 0.0
      %v718 = vmax.f32 %v658, 0.0
      %v719 = vmax.f32 %v663, 0.0
      %v720 = vmax.f32 %v666, 0.0
      %v721 = vmax.f32 %v671, 0.0
      %v722 = vmax.f32 %v674, 0.0
      %v723 = vmax.f32 %v679, 0.0
      %v724 = vmax.f32 %v682, 0.0
      %v725 = vmax.f32 %v687, 0.0
      %v726 = vmax.f32 %v690, 0.0
      %v727 = vmax.f32 %v695, 0.0
      %v728 = vmax.f32 %v698, 0.0
      %v729 = vmax.f32 %v703, 0.0
      %v730 = vmax.f32 %v706, 0.0
      %v731 = vmax.f32 %v711, 0.0
      %v732 = vmax.f32 %v714, 0.0
      %v733 = vpack.c.bf16 %v718, %v717
      %v734 = vpack.c.bf16 %v720, %v719
      %v735 = vpack.c.bf16 %v722, %v721
      %v736 = vpack.c.bf16 %v724, %v723
      %v737 = vpack.c.bf16 %v726, %v725
      %v738 = vpack.c.bf16 %v728, %v727
      %v739 = vpack.c.bf16 %v730, %v729
      %v740 = vpack.c.bf16 %v732, %v731
      %v749 = vunpack.c.l.b16 %v733
      %v750 = vunpack.c.h.b16 %v733
      %v751 = vunpack.c.l.b16 %v734
      %v752 = vunpack.c.h.b16 %v734
      %v753 = vunpack.c.l.b16 %v735
      %v754 = vunpack.c.h.b16 %v735
      %v755 = vunpack.c.l.b16 %v736
      %v756 = vunpack.c.h.b16 %v736
      %v757 = vunpack.c.l.b16 %v737
      %v758 = vunpack.c.h.b16 %v737
      %v759 = vunpack.c.l.b16 %v738
      %v760 = vunpack.c.h.b16 %v738
      %v761 = vunpack.c.l.b16 %v739
      %v762 = vunpack.c.h.b16 %v739
      %v763 = vunpack.c.l.b16 %v740
      %v764 = vunpack.c.h.b16 %v740
      %v765 = vpack.c.b16 %v749, %v749
      %v766 = vpack.c.b16 %v750, %v750
      %v767 = vpack.c.b16 %v751, %v751
      %v768 = vpack.c.b16 %v752, %v752
      %v769 = vpack.c.b16 %v753, %v753
      %v770 = vpack.c.b16 %v754, %v754
      %v771 = vpack.c.b16 %v755, %v755
      %v772 = vpack.c.b16 %v756, %v756
      %v773 = vpack.c.b16 %v757, %v757
      %v774 = vpack.c.b16 %v758, %v758
      %v775 = vpack.c.b16 %v759, %v759
      %v776 = vpack.c.b16 %v760, %v760
      %v777 = vpack.c.b16 %v761, %v761
      %v778 = vpack.c.b16 %v762, %v762
      %v779 = vpack.c.b16 %v763, %v763
      %v780 = vpack.c.b16 %v764, %v764
      %s797 = scalar_lea.vmem %s213, 64
      %798 = vst.msk [vmem:[%s797] sm:$0xf] %vm586, %v765
      %799 = vst.msk [vmem:[%s797 + $0x4] sm:$0xf] %vm586, %v766
      %800 = vst.msk [vmem:[%s797 + $0x8] sm:$0xf] %vm586, %v767
      %801 = vst.msk [vmem:[%s797 + $0xc] sm:$0xf] %vm586, %v768
      %802 = vst.msk [vmem:[%s797 + $0x10] sm:$0xf] %vm586, %v769
      %803 = vst.msk [vmem:[%s797 + $0x14] sm:$0xf] %vm586, %v770
      %804 = vst.msk [vmem:[%s797 + $0x18] sm:$0xf] %vm586, %v771
      %805 = vst.msk [vmem:[%s797 + $0x1c] sm:$0xf] %vm586, %v772
      %806 = vst.msk [vmem:[%s797 + $0x20] sm:$0xf] %vm586, %v773
      %807 = vst.msk [vmem:[%s797 + $0x24] sm:$0xf] %vm586, %v774
      %808 = vst.msk [vmem:[%s797 + $0x28] sm:$0xf] %vm586, %v775
      %809 = vst.msk [vmem:[%s797 + $0x2c] sm:$0xf] %vm586, %v776
      %810 = vst.msk [vmem:[%s797 + $0x30] sm:$0xf] %vm586, %v777
      %811 = vst.msk [vmem:[%s797 + $0x34] sm:$0xf] %vm586, %v778
      %812 = vst.msk [vmem:[%s797 + $0x38] sm:$0xf] %vm586, %v779
      %813 = vst.msk [vmem:[%s797 + $0x3c] sm:$0xf] %vm586, %v780
      %s814 = scalar_lea.vmem %s202, 32
      %v815 = vld [vmem:[%s814] sm:$0xf]
      %v816 = vld [vmem:[%s814 + $0x4] sm:$0xf]
      %v817 = vld [vmem:[%s814 + $0x8] sm:$0xf]
      %v818 = vld [vmem:[%s814 + $0xc] sm:$0xf]
      %v823 = vunpack.c.l.b16 %v815
      %v824 = vunpack.c.l.b16 %v816
      %v825 = vunpack.c.l.b16 %v817
      %v826 = vunpack.c.l.b16 %v818
      %v827 = vpack.c.b16 %v824, %v823
      %v828 = vpack.c.b16 %v826, %v825
      %831 = vmatprep.subr.bf16.mxu0 0
      %832 = vmatpush1.bf16.msra.mxu0 %v827
      %833 = vmatprep.subr.bf16.mxu0 0
      %834 = vmatpush1.bf16.msra.mxu0 %v828
      %835 = vmatprep.subr.bf16.mxu0 0
      %836 = vmatpush1.bf16.msra.mxu0 0
      %837 = vmatprep.subr.bf16.mxu0 0
      %838 = vmatpush1.bf16.msra.mxu0 0
      %839 = vmatprep.subr.bf16.mxu0 0
      %840 = vmatpush1.bf16.msra.mxu0 0
      %841 = vmatprep.subr.bf16.mxu0 0
      %842 = vmatpush1.bf16.msra.mxu0 0
      %843 = vmatprep.subr.bf16.mxu0 0
      %844 = vmatpush1.bf16.msra.mxu0 0
      %845 = vmatprep.subr.bf16.mxu0 0
      %846 = vmatpush1.bf16.msra.mxu0 0
      %847 = vmatprep.subr.bf16.mxu0 0
      %848 = vmatpush1.bf16.msra.mxu0 0
      %849 = vmatprep.subr.bf16.mxu0 0
      %850 = vmatpush1.bf16.msra.mxu0 0
      %851 = vmatprep.subr.bf16.mxu0 0
      %852 = vmatpush1.bf16.msra.mxu0 0
      %853 = vmatprep.subr.bf16.mxu0 0
      %854 = vmatpush1.bf16.msra.mxu0 0
      %855 = vmatprep.subr.bf16.mxu0 0
      %856 = vmatpush1.bf16.msra.mxu0 0
      %857 = vmatprep.subr.bf16.mxu0 0
      %858 = vmatpush1.bf16.msra.mxu0 0
      %859 = vmatprep.subr.bf16.mxu0 0
      %860 = vmatpush1.bf16.msra.mxu0 0
      %861 = vmatprep.subr.bf16.mxu0 0
      %862 = vmatpush1.bf16.msra.mxu0 0
      %863 = vmatprep.mubr.bf16.mxu0 0
      %864 = vmatmul.mubr.bf16.gmra.mrb[0].mxu0 %v386
      %v865 = vpop.f32.mrb[0].mxu0
      %v866 = vadd.f32 %v255, %v865
      %v867 = vpop.f32.mrb[0].mxu0
      %v868 = vpop.f32.mrb[0].mxu0
      %v869 = vadd.f32 %v260, %v868
      %v870 = vpop.f32.mrb[0].mxu0
      %871 = vmatprep.mubr.bf16.mxu0 0
      %872 = vmatmul.mubr.bf16.gmra.mrb[0].mxu0 %v389
      %v873 = vpop.f32.mrb[0].mxu0
      %v874 = vadd.f32 %v265, %v873
      %v875 = vpop.f32.mrb[0].mxu0
      %v876 = vpop.f32.mrb[0].mxu0
      %v877 = vadd.f32 %v270, %v876
      %v878 = vpop.f32.mrb[0].mxu0
      %879 = vmatprep.mubr.bf16.mxu0 0
      %880 = vmatmul.mubr.bf16.gmra.mrb[0].mxu0 %v392
      %v881 = vpop.f32.mrb[0].mxu0
      %v882 = vadd.f32 %v275, %v881
      %v883 = vpop.f32.mrb[0].mxu0
      %v884 = vpop.f32.mrb[0].mxu0
      %v885 = vadd.f32 %v280, %v884
      %v886 = vpop.f32.mrb[0].mxu0
      %887 = vmatprep.mubr.bf16.mxu0 0
      %888 = vmatmul.mubr.bf16.gmra.mrb[0].mxu0 %v395
      %v889 = vpop.f32.mrb[0].mxu0
      %v890 = vadd.f32 %v285, %v889
      %v891 = vpop.f32.mrb[0].mxu0
      %v892 = vpop.f32.mrb[0].mxu0
      %v893 = vadd.f32 %v290, %v892
      %v894 = vpop.f32.mrb[0].mxu0
      %895 = vmatprep.mubr.bf16.mxu0 0
      %896 = vmatmul.mubr.bf16.gmra.mrb[0].mxu0 %v398
      %v897 = vpop.f32.mrb[0].mxu0
      %v898 = vadd.f32 %v295, %v897
      %v899 = vpop.f32.mrb[0].mxu0
      %v900 = vpop.f32.mrb[0].mxu0
      %v901 = vadd.f32 %v300, %v900
      %v902 = vpop.f32.mrb[0].mxu0
      %903 = vmatprep.mubr.bf16.mxu0 0
      %904 = vmatmul.mubr.bf16.gmra.mrb[0].mxu0 %v401
      %v905 = vpop.f32.mrb[0].mxu0
      %v906 = vadd.f32 %v305, %v905
      %v907 = vpop.f32.mrb[0].mxu0
      %v908 = vpop.f32.mrb[0].mxu0
      %v909 = vadd.f32 %v310, %v908
      %v910 = vpop.f32.mrb[0].mxu0
      %911 = vmatprep.mubr.bf16.mxu0 0
      %912 = vmatmul.mubr.bf16.gmra.mrb[0].mxu0 %v404
      %v913 = vpop.f32.mrb[0].mxu0
      %v914 = vadd.f32 %v315, %v913
      %v915 = vpop.f32.mrb[0].mxu0
      %v916 = vpop.f32.mrb[0].mxu0
      %v917 = vadd.f32 %v320, %v916
      %v918 = vpop.f32.mrb[0].mxu0
      %919 = vmatprep.mubr.bf16.mxu0 0
      %920 = vmatmul.mubr.bf16.gmra.mrb[0].mxu0 %v407
      %v921 = vpop.f32.mrb[0].mxu0
      %v922 = vadd.f32 %v325, %v921
      %v923 = vpop.f32.mrb[0].mxu0
      %v924 = vpop.f32.mrb[0].mxu0
      %v925 = vadd.f32 %v330, %v924
      %v926 = vpop.f32.mrb[0].mxu0
      %927 = vdwg.mxu0
      %v928 = vmax.f32 %v866, 0.0
      %v929 = vmax.f32 %v869, 0.0
      %v930 = vmax.f32 %v874, 0.0
      %v931 = vmax.f32 %v877, 0.0
      %v932 = vmax.f32 %v882, 0.0
      %v933 = vmax.f32 %v885, 0.0
      %v934 = vmax.f32 %v890, 0.0
      %v935 = vmax.f32 %v893, 0.0
      %v936 = vmax.f32 %v898, 0.0
      %v937 = vmax.f32 %v901, 0.0
      %v938 = vmax.f32 %v906, 0.0
      %v939 = vmax.f32 %v909, 0.0
      %v940 = vmax.f32 %v914, 0.0
      %v941 = vmax.f32 %v917, 0.0
      %v942 = vmax.f32 %v922, 0.0
      %v943 = vmax.f32 %v925, 0.0
      %v944 = vpack.c.bf16 %v929, %v928
      %v945 = vpack.c.bf16 %v931, %v930
      %v946 = vpack.c.bf16 %v933, %v932
      %v947 = vpack.c.bf16 %v935, %v934
      %v948 = vpack.c.bf16 %v937, %v936
      %v949 = vpack.c.bf16 %v939, %v938
      %v950 = vpack.c.bf16 %v941, %v940
      %v951 = vpack.c.bf16 %v943, %v942
      %v960 = vunpack.c.l.b16 %v944
      %v961 = vunpack.c.h.b16 %v944
      %v962 = vunpack.c.l.b16 %v945
      %v963 = vunpack.c.h.b16 %v945
      %v964 = vunpack.c.l.b16 %v946
      %v965 = vunpack.c.h.b16 %v946
      %v966 = vunpack.c.l.b16 %v947
      %v967 = vunpack.c.h.b16 %v947
      %v968 = vunpack.c.l.b16 %v948
      %v969 = vunpack.c.h.b16 %v948
      %v970 = vunpack.c.l.b16 %v949
      %v971 = vunpack.c.h.b16 %v949
      %v972 = vunpack.c.l.b16 %v950
      %v973 = vunpack.c.h.b16 %v950
      %v974 = vunpack.c.l.b16 %v951
      %v975 = vunpack.c.h.b16 %v951
      %v976 = vpack.c.b16 %v960, %v960
      %v977 = vpack.c.b16 %v961, %v961
      %v978 = vpack.c.b16 %v962, %v962
      %v979 = vpack.c.b16 %v963, %v963
      %v980 = vpack.c.b16 %v964, %v964
      %v981 = vpack.c.b16 %v965, %v965
      %v982 = vpack.c.b16 %v966, %v966
      %v983 = vpack.c.b16 %v967, %v967
      %v984 = vpack.c.b16 %v968, %v968
      %v985 = vpack.c.b16 %v969, %v969
      %v986 = vpack.c.b16 %v970, %v970
      %v987 = vpack.c.b16 %v971, %v971
      %v988 = vpack.c.b16 %v972, %v972
      %v989 = vpack.c.b16 %v973, %v973
      %v990 = vpack.c.b16 %v974, %v974
      %v991 = vpack.c.b16 %v975, %v975
      %s1008 = scalar_lea.vmem %s213, 128
      %1009 = vst.msk [vmem:[%s1008] sm:$0xf] %vm586, %v976
      %1010 = vst.msk [vmem:[%s1008 + $0x4] sm:$0xf] %vm586, %v977
      %1011 = vst.msk [vmem:[%s1008 + $0x8] sm:$0xf] %vm586, %v978
      %1012 = vst.msk [vmem:[%s1008 + $0xc] sm:$0xf] %vm586, %v979
      %1013 = vst.msk [vmem:[%s1008 + $0x10] sm:$0xf] %vm586, %v980
      %1014 = vst.msk [vmem:[%s1008 + $0x14] sm:$0xf] %vm586, %v981
      %1015 = vst.msk [vmem:[%s1008 + $0x18] sm:$0xf] %vm586, %v982
      %1016 = vst.msk [vmem:[%s1008 + $0x1c] sm:$0xf] %vm586, %v983
      %1017 = vst.msk [vmem:[%s1008 + $0x20] sm:$0xf] %vm586, %v984
      %1018 = vst.msk [vmem:[%s1008 + $0x24] sm:$0xf] %vm586, %v985
      %1019 = vst.msk [vmem:[%s1008 + $0x28] sm:$0xf] %vm586, %v986
      %1020 = vst.msk [vmem:[%s1008 + $0x2c] sm:$0xf] %vm586, %v987
      %1021 = vst.msk [vmem:[%s1008 + $0x30] sm:$0xf] %vm586, %v988
      %1022 = vst.msk [vmem:[%s1008 + $0x34] sm:$0xf] %vm586, %v989
      %1023 = vst.msk [vmem:[%s1008 + $0x38] sm:$0xf] %vm586, %v990
      %1024 = vst.msk [vmem:[%s1008 + $0x3c] sm:$0xf] %vm586, %v991
      %s1025 = scalar_lea.vmem %s202, 48
      %v1026 = vld [vmem:[%s1025] sm:$0xf]
      %v1027 = vld [vmem:[%s1025 + $0x4] sm:$0xf]
      %v1028 = vld [vmem:[%s1025 + $0x8] sm:$0xf]
      %v1029 = vld [vmem:[%s1025 + $0xc] sm:$0xf]
      %v1034 = vunpack.c.l.b16 %v1026
      %v1035 = vunpack.c.l.b16 %v1027
      %v1036 = vunpack.c.l.b16 %v1028
      %v1037 = vunpack.c.l.b16 %v1029
      %v1038 = vpack.c.b16 %v1035, %v1034
      %v1039 = vpack.c.b16 %v1037, %v1036
      %1042 = vmatprep.subr.bf16.mxu0 0
      %1043 = vmatpush1.bf16.msra.mxu0 %v1038
      %1044 = vmatprep.subr.bf16.mxu0 0
      %1045 = vmatpush1.bf16.msra.mxu0 %v1039
      %1046 = vmatprep.subr.bf16.mxu0 0
      %1047 = vmatpush1.bf16.msra.mxu0 0
      %1048 = vmatprep.subr.bf16.mxu0 0
      %1049 = vmatpush1.bf16.msra.mxu0 0
      %1050 = vmatprep.subr.bf16.mxu0 0
      %1051 = vmatpush1.bf16.msra.mxu0 0
      %1052 = vmatprep.subr.bf16.mxu0 0
      %1053 = vmatpush1.bf16.msra.mxu0 0
      %1054 = vmatprep.subr.bf16.mxu0 0
      %1055 = vmatpush1.bf16.msra.mxu0 0
      %1056 = vmatprep.subr.bf16.mxu0 0
      %1057 = vmatpush1.bf16.msra.mxu0 0
      %1058 = vmatprep.subr.bf16.mxu0 0
      %1059 = vmatpush1.bf16.msra.mxu0 0
      %1060 = vmatprep.subr.bf16.mxu0 0
      %1061 = vmatpush1.bf16.msra.mxu0 0
      %1062 = vmatprep.subr.bf16.mxu0 0
      %1063 = vmatpush1.bf16.msra.mxu0 0
      %1064 = vmatprep.subr.bf16.mxu0 0
      %1065 = vmatpush1.bf16.msra.mxu0 0
      %1066 = vmatprep.subr.bf16.mxu0 0
      %1067 = vmatpush1.bf16.msra.mxu0 0
      %1068 = vmatprep.subr.bf16.mxu0 0
      %1069 = vmatpush1.bf16.msra.mxu0 0
      %1070 = vmatprep.subr.bf16.mxu0 0
      %1071 = vmatpush1.bf16.msra.mxu0 0
      %1072 = vmatprep.subr.bf16.mxu0 0
      %1073 = vmatpush1.bf16.msra.mxu0 0
      %1074 = vmatprep.mubr.bf16.mxu0 0
      %1075 = vmatmul.mubr.bf16.gmra.mrb[0].mxu0 %v386
      %v1076 = vpop.f32.mrb[0].mxu0
      %v1077 = vadd.f32 %v255, %v1076
      %v1078 = vpop.f32.mrb[0].mxu0
      %v1079 = vpop.f32.mrb[0].mxu0
      %v1080 = vadd.f32 %v260, %v1079
      %v1081 = vpop.f32.mrb[0].mxu0
      %1082 = vmatprep.mubr.bf16.mxu0 0
      %1083 = vmatmul.mubr.bf16.gmra.mrb[0].mxu0 %v389
      %v1084 = vpop.f32.mrb[0].mxu0
      %v1085 = vadd.f32 %v265, %v1084
      %v1086 = vpop.f32.mrb[0].mxu0
      %v1087 = vpop.f32.mrb[0].mxu0
      %v1088 = vadd.f32 %v270, %v1087
      %v1089 = vpop.f32.mrb[0].mxu0
      %1090 = vmatprep.mubr.bf16.mxu0 0
      %1091 = vmatmul.mubr.bf16.gmra.mrb[0].mxu0 %v392
      %v1092 = vpop.f32.mrb[0].mxu0
      %v1093 = vadd.f32 %v275, %v1092
      %v1094 = vpop.f32.mrb[0].mxu0
      %v1095 = vpop.f32.mrb[0].mxu0
      %v1096 = vadd.f32 %v280, %v1095
      %v1097 = vpop.f32.mrb[0].mxu0
      %1098 = vmatprep.mubr.bf16.mxu0 0
      %1099 = vmatmul.mubr.bf16.gmra.mrb[0].mxu0 %v395
      %v1100 = vpop.f32.mrb[0].mxu0
      %v1101 = vadd.f32 %v285, %v1100
      %v1102 = vpop.f32.mrb[0].mxu0
      %v1103 = vpop.f32.mrb[0].mxu0
      %v1104 = vadd.f32 %v290, %v1103
      %v1105 = vpop.f32.mrb[0].mxu0
      %1106 = vmatprep.mubr.bf16.mxu0 0
      %1107 = vmatmul.mubr.bf16.gmra.mrb[0].mxu0 %v398
      %v1108 = vpop.f32.mrb[0].mxu0
      %v1109 = vadd.f32 %v295, %v1108
      %v1110 = vpop.f32.mrb[0].mxu0
      %v1111 = vpop.f32.mrb[0].mxu0
      %v1112 = vadd.f32 %v300, %v1111
      %v1113 = vpop.f32.mrb[0].mxu0
      %1114 = vmatprep.mubr.bf16.mxu0 0
      %1115 = vmatmul.mubr.bf16.gmra.mrb[0].mxu0 %v401
      %v1116 = vpop.f32.mrb[0].mxu0
      %v1117 = vadd.f32 %v305, %v1116
      %v1118 = vpop.f32.mrb[0].mxu0
      %v1119 = vpop.f32.mrb[0].mxu0
      %v1120 = vadd.f32 %v310, %v1119
      %v1121 = vpop.f32.mrb[0].mxu0
      %1122 = vmatprep.mubr.bf16.mxu0 0
      %1123 = vmatmul.mubr.bf16.gmra.mrb[0].mxu0 %v404
      %v1124 = vpop.f32.mrb[0].mxu0
      %v1125 = vadd.f32 %v315, %v1124
      %v1126 = vpop.f32.mrb[0].mxu0
      %v1127 = vpop.f32.mrb[0].mxu0
      %v1128 = vadd.f32 %v320, %v1127
      %v1129 = vpop.f32.mrb[0].mxu0
      %1130 = vmatprep.mubr.bf16.mxu0 0
      %1131 = vmatmul.mubr.bf16.gmra.mrb[0].mxu0 %v407
      %v1132 = vpop.f32.mrb[0].mxu0
      %v1133 = vadd.f32 %v325, %v1132
      %v1134 = vpop.f32.mrb[0].mxu0
      %v1135 = vpop.f32.mrb[0].mxu0
      %v1136 = vadd.f32 %v330, %v1135
      %v1137 = vpop.f32.mrb[0].mxu0
      %1138 = vdwg.mxu0
      %v1139 = vmax.f32 %v1077, 0.0
      %v1140 = vmax.f32 %v1080, 0.0
      %v1141 = vmax.f32 %v1085, 0.0
      %v1142 = vmax.f32 %v1088, 0.0
      %v1143 = vmax.f32 %v1093, 0.0
      %v1144 = vmax.f32 %v1096, 0.0
      %v1145 = vmax.f32 %v1101, 0.0
      %v1146 = vmax.f32 %v1104, 0.0
      %v1147 = vmax.f32 %v1109, 0.0
      %v1148 = vmax.f32 %v1112, 0.0
      %v1149 = vmax.f32 %v1117, 0.0
      %v1150 = vmax.f32 %v1120, 0.0
      %v1151 = vmax.f32 %v1125, 0.0
      %v1152 = vmax.f32 %v1128, 0.0
      %v1153 = vmax.f32 %v1133, 0.0
      %v1154 = vmax.f32 %v1136, 0.0
      %v1155 = vpack.c.bf16 %v1140, %v1139
      %v1156 = vpack.c.bf16 %v1142, %v1141
      %v1157 = vpack.c.bf16 %v1144, %v1143
      %v1158 = vpack.c.bf16 %v1146, %v1145
      %v1159 = vpack.c.bf16 %v1148, %v1147
      %v1160 = vpack.c.bf16 %v1150, %v1149
      %v1161 = vpack.c.bf16 %v1152, %v1151
      %v1162 = vpack.c.bf16 %v1154, %v1153
      %v1171 = vunpack.c.l.b16 %v1155
      %v1172 = vunpack.c.h.b16 %v1155
      %v1173 = vunpack.c.l.b16 %v1156
      %v1174 = vunpack.c.h.b16 %v1156
      %v1175 = vunpack.c.l.b16 %v1157
      %v1176 = vunpack.c.h.b16 %v1157
      %v1177 = vunpack.c.l.b16 %v1158
      %v1178 = vunpack.c.h.b16 %v1158
      %v1179 = vunpack.c.l.b16 %v1159
      %v1180 = vunpack.c.h.b16 %v1159
      %v1181 = vunpack.c.l.b16 %v1160
      %v1182 = vunpack.c.h.b16 %v1160
      %v1183 = vunpack.c.l.b16 %v1161
      %v1184 = vunpack.c.h.b16 %v1161
      %v1185 = vunpack.c.l.b16 %v1162
      %v1186 = vunpack.c.h.b16 %v1162
      %v1187 = vpack.c.b16 %v1171, %v1171
      %v1188 = vpack.c.b16 %v1172, %v1172
      %v1189 = vpack.c.b16 %v1173, %v1173
      %v1190 = vpack.c.b16 %v1174, %v1174
      %v1191 = vpack.c.b16 %v1175, %v1175
      %v1192 = vpack.c.b16 %v1176, %v1176
      %v1193 = vpack.c.b16 %v1177, %v1177
      %v1194 = vpack.c.b16 %v1178, %v1178
      %v1195 = vpack.c.b16 %v1179, %v1179
      %v1196 = vpack.c.b16 %v1180, %v1180
      %v1197 = vpack.c.b16 %v1181, %v1181
      %v1198 = vpack.c.b16 %v1182, %v1182
      %v1199 = vpack.c.b16 %v1183, %v1183
      %v1200 = vpack.c.b16 %v1184, %v1184
      %v1201 = vpack.c.b16 %v1185, %v1185
      %v1202 = vpack.c.b16 %v1186, %v1186
      %s1219 = scalar_lea.vmem %s213, 192
      %1220 = vst.msk [vmem:[%s1219] sm:$0xf] %vm586, %v1187
      %1221 = vst.msk [vmem:[%s1219 + $0x4] sm:$0xf] %vm586, %v1188
      %1222 = vst.msk [vmem:[%s1219 + $0x8] sm:$0xf] %vm586, %v1189
      %1223 = vst.msk [vmem:[%s1219 + $0xc] sm:$0xf] %vm586, %v1190
      %1224 = vst.msk [vmem:[%s1219 + $0x10] sm:$0xf] %vm586, %v1191
      %1225 = vst.msk [vmem:[%s1219 + $0x14] sm:$0xf] %vm586, %v1192
      %1226 = vst.msk [vmem:[%s1219 + $0x18] sm:$0xf] %vm586, %v1193
      %1227 = vst.msk [vmem:[%s1219 + $0x1c] sm:$0xf] %vm586, %v1194
      %1228 = vst.msk [vmem:[%s1219 + $0x20] sm:$0xf] %vm586, %v1195
      %1229 = vst.msk [vmem:[%s1219 + $0x24] sm:$0xf] %vm586, %v1196
      %1230 = vst.msk [vmem:[%s1219 + $0x28] sm:$0xf] %vm586, %v1197
      %1231 = vst.msk [vmem:[%s1219 + $0x2c] sm:$0xf] %vm586, %v1198
      %1232 = vst.msk [vmem:[%s1219 + $0x30] sm:$0xf] %vm586, %v1199
      %1233 = vst.msk [vmem:[%s1219 + $0x34] sm:$0xf] %vm586, %v1200
      %1234 = vst.msk [vmem:[%s1219 + $0x38] sm:$0xf] %vm586, %v1201
      %1235 = vst.msk [vmem:[%s1219 + $0x3c] sm:$0xf] %vm586, %v1202
      %s1236 = smul.u32 4, %s19
      %p1237 = scmp.lt.s32.totalorder %s18, 1
      %s1238 = scalar_select %p1237, %s18, 1
      %p1239 = scmp.lt.s32.totalorder %s1236, 7
      %s1240 = scalar_select %p1239, %s1236, 7
      %s1241 = smul.addr %s1240, 16
      %s1242 = smul.addr %s1238, 128
      %s1243 = sadd.s32 %s1241, %s1242
      %s1244 = smul.addr %s1243, 4
      %s1245 = scalar_lea.vmem %s3, %s1244
      // Predicated region
      $region33: #{upsampling_deconv_block.1} parent=31 // pred_check
        %p1246 = pneg %p116
      $region34: #{upsampling_deconv_block.1} parent=31 // pred_check_branch
        %1248 = sbr.rel (%p1246) target = $region36
      $region35: #{upsampling_deconv_block.1} parent=31 // pred_region
        %s1249 = smul.u32 4, %s19
      $region36: #{upsampling_deconv_block.1} parent=31 // pred_fallthru
        _
    $region32: #{upsampling_deconv_block.1} parent=5 // pred_fallthru
      _
    %p1250 = scmp.le.s32.totalorder 2, %s9
    // Predicated region
    $region37: #{upsampling_deconv_block.1} parent=5 // pred_check
      %p1251 = pneg %p1250
    $region38: #{upsampling_deconv_block.1} parent=5 // pred_check_branch
      %1253 = sbr.rel (%p1251) target = $region40
    $region39: #{upsampling_deconv_block.1} parent=5 // pred_region
      %s1254 = ssub.s32 %s9, 2
      // Predicated region
      $region41: #{upsampling_deconv_block.1} parent=39 // pred_check
        %p1255 = pneg %p122
      $region42: #{upsampling_deconv_block.1} parent=39 // pred_check_branch
        %1257 = sbr.rel (%p1255) target = $region44
      $region43: #{upsampling_deconv_block.1} parent=39 // pred_region
        %s1258 = smul.u32 4, %s21
        %p1259 = scmp.lt.s32.totalorder %s20, 1
        %s1260 = scalar_select %p1259, %s20, 1
        %p1261 = scmp.lt.s32.totalorder %s1258, 7
        %s1262 = scalar_select %p1261, %s1258, 7
        %s1263 = smul.addr %s1262, 16
        %s1264 = smul.addr %s1260, 128
        %s1265 = sadd.s32 %s1263, %s1264
        %s1266 = smul.addr %s1265, 4
        %s1267 = scalar_lea.vmem %s3, %s1266
      $region44: #{upsampling_deconv_block.1} parent=39 // pred_fallthru
        _
    $region40: #{upsampling_deconv_block.1} parent=5 // pred_fallthru
      _
  $region6: #{upsampling_deconv_block.1} parent=0 // loop_footer
    %s13 = sadd.s32 1, %s9
  $region7: #{upsampling_deconv_block.1} parent=0 // loop_footer_branch
    %8 = sbr.rel target = $region3
  $region8: #{upsampling_deconv_block.1} parent=0 // loop_exit
    _

</llo_original>
